<compile_context>
chip_gen: v6e
topology: v6e:2x2x1
jax: 0.10.0
libtpu: 0.0.40
codegen_flags: <defaults>
</compile_context>

<pallas_src>
import jax
import jax.numpy as jnp
from jax.experimental import pallas as pl
from jax.experimental.pallas import tpu as pltpu


def _pointwise_conv1d_kernel(x_ref, w_ref, b_ref, o_ref):
    # x_ref: (B_blk, C_in, TILE_T)   current (batch-block, T-tile), channels-first
    # w_ref: (C_out, C_in)           full weight (kernel_size=1 squeezed), grid-invariant
    # b_ref: (C_out, 1)   float32    bias column, broadcast over T (lane) dim
    # o_ref: (B_blk, C_out, TILE_T)
    w = w_ref[...]
    b = b_ref[...]
    if x_ref.shape[0] == 1:
        # Plain MXU matmul: contract over C_in, T stays on lanes.
        x = x_ref[0]                                              # (C_in, TILE_T)
        y = jnp.dot(w, x, preferred_element_type=jnp.float32)     # (C_out, TILE_T)
        o_ref[0] = (y + b).astype(o_ref.dtype)
    else:
        # Batch-packed path for short sequences (amortizes per-step overhead).
        x = x_ref[...]                                            # (B_blk, C_in, T)
        y = jnp.einsum("oc,bct->bot", w, x,
                       preferred_element_type=jnp.float32)        # (B_blk, C_out, T)
        o_ref[...] = (y + b).astype(o_ref.dtype)


def _round_up(n: int, m: int) -> int:
    return ((n + m - 1) // m) * m


def pointwise_conv1d(x, weight, bias=None, stride: int = 1, padding: int = 0,
                     tile_t: int = 1024, compute_dtype=None):
    """Pointwise (kernel_size=1) Conv1d, matching nn.Conv1d semantics.

    Args:
      x:      (B, C_in, T) array -- PyTorch Conv1d input layout.
      weight: (C_out, C_in, 1) array -- PyTorch Conv1d weight.
      bias:   (C_out,) array or None.
      stride, padding: Conv1d stride / zero-padding (handled as thin JAX glue).
      tile_t: T-tile width (multiple of 128; multiples of 256 preferred).
      compute_dtype: optional dtype (e.g. jnp.bfloat16) used for x and W inside
        the kernel; accumulation stays float32, output dtype matches x.

    Returns:
      (B, C_out, T_out) array in x.dtype.
    """
    B, C_in, T = x.shape
    C_out = weight.shape[0]
    out_dtype = x.dtype

    # --- stride / padding glue (kernel_size == 1 so stride is subsampling) ---
    if padding > 0:
        # TODO(synk): zero-padding is one extra XLA HBM pass over x; uncommon
        # for pointwise conv so it is not folded into the kernel DMA.
        x = jnp.pad(x, ((0, 0), (0, 0), (padding, padding)))
    if stride > 1:
        # TODO(synk): strided slice is one extra XLA HBM pass over x; fold into
        # a manual strided DMA (memory_space=pl.ANY) if this path gets hot.
        x = x[:, :, ::stride]
    T_out = x.shape[2]

    cdt = jnp.dtype(compute_dtype) if compute_dtype is not None else jnp.dtype(x.dtype)
    x_in = x.astype(cdt)
    w2d = weight[:, :, 0].astype(cdt)                              # (C_out, C_in)
    if bias is None:
        b2d = jnp.zeros((C_out, 1), dtype=jnp.float32)
    else:
        b2d = bias.reshape(C_out, 1).astype(jnp.float32)           # (C_out, 1)

    # --- choose (B_blk, TILE_T) ---
    if T_out < 128:
        # Lane-sparse regime: pack batches per grid step (stores are masked
        # regardless since the lane width < 128).
        TILE_T = max(T_out, 1)
        B_blk = min(B, max(1, 256 // max(T_out, 1)))
    else:
        B_blk = 1
        if T_out <= tile_t:
            TILE_T = T_out                      # single full-extent block: legal
            if B == 1 and T_out >= 256:
                # v7x has 2 TensorCores; avoid a degenerate (1, 1) grid.
                TILE_T = _round_up(pl.cdiv(T_out, 2), 128)
        else:
            assert tile_t % 128 == 0, "tile_t must be a multiple of 128"
            TILE_T = tile_t

    grid = (pl.cdiv(B, B_blk), pl.cdiv(T_out, TILE_T))

    # --- explicit VMEM budget: 2x (x, out) blocks + single-buffered weight ---
    t_pad = _round_up(TILE_T, 128)
    x_blk = B_blk * _round_up(C_in, 8) * t_pad * cdt.itemsize
    o_blk = B_blk * _round_up(C_out, 8) * t_pad * jnp.dtype(out_dtype).itemsize
    w_bytes = _round_up(C_out, 8) * _round_up(C_in, 128) * cdt.itemsize
    need = 2 * (x_blk + o_blk) + w_bytes + (1 << 20)
    vmem_limit = int(min(max(need + need // 4, 32 << 20), 100 << 20))

    def _pcall(const_pipeline_mode):
        kw = {} if const_pipeline_mode is None else {"pipeline_mode": const_pipeline_mode}
        return pl.pallas_call(
            _pointwise_conv1d_kernel,
            out_shape=jax.ShapeDtypeStruct((B, C_out, T_out), out_dtype),
            grid_spec=pltpu.PrefetchScalarGridSpec(
                num_scalar_prefetch=0,
                grid=grid,
                in_specs=[
                    pl.BlockSpec((B_blk, C_in, TILE_T), lambda b, t: (b, 0, t)),
                    pl.BlockSpec((C_out, C_in), lambda b, t: (0, 0), **kw),
                    pl.BlockSpec((C_out, 1), lambda b, t: (0, 0), **kw),
                ],
                out_specs=pl.BlockSpec((B_blk, C_out, TILE_T),
                                       lambda b, t: (b, 0, t)),
            ),
            compiler_params=pltpu.CompilerParams(
                # No reduction axis: both (batch, T-tile) axes are independent,
                # so both are parallel (lets v7x shard grid points across 2 TCs).
                dimension_semantics=("parallel", "parallel"),
                vmem_limit_bytes=vmem_limit,
            ),
        )(x_in, w2d, b2d)

    try:
        # Grid-invariant weight/bias: single-buffer to save VMEM.
        out = _pcall(pl.Buffered(1))
    except Exception:
        # Fallback for Pallas versions that reject single-buffered inputs.
        out = _pcall(None)
    return out


def _ref_conv1d(x, weight, bias, stride=1, padding=0):
    if padding > 0:
        x = jnp.pad(x, ((0, 0), (0, 0), (padding, padding)))
    if stride > 1:
        x = x[:, :, ::stride]
    y = jnp.einsum("oc,bct->bot", weight[:, :, 0], x)
    if bias is not None:
        y = y + bias[None, :, None]
    return y


if __name__ == "__main__":
    key = jax.random.PRNGKey(0)
    kx, kw, kb = jax.random.split(key, 3)

    B, C_IN, C_OUT, T = 2, 4, 8, 16
    x = jax.random.normal(kx, (B, C_IN, T), dtype=jnp.float32)
    weight = jax.random.normal(kw, (C_OUT, C_IN, 1), dtype=jnp.float32) * 0.1
    bias = jax.random.normal(kb, (C_OUT,), dtype=jnp.float32) * 0.1

    # --- 1) short-T batch-packed path (T < 128) ---
    out = jax.block_until_ready(pointwise_conv1d(x, weight, bias))
    ref = _ref_conv1d(x, weight, bias)
    assert out.shape == (B, C_OUT, T)
    assert jnp.allclose(out, ref, atol=1e-5, rtol=1e-5)

    # --- 2) tiled-T path with ragged last block (no wrapper pad/slice) ---
    T2 = 200
    x2 = jax.random.normal(kx, (B, C_IN, T2), dtype=jnp.float32)
    out2 = jax.block_until_ready(pointwise_conv1d(x2, weight, bias, tile_t=128))
    ref2 = _ref_conv1d(x2, weight, bias)
    assert out2.shape == (B, C_OUT, T2)
    assert jnp.allclose(out2, ref2, atol=1e-5, rtol=1e-5)

    # --- 3) B == 1: T is split so both v7x TensorCores get work ---
    T3 = 384
    x3 = jax.random.normal(kx, (1, C_IN, T3), dtype=jnp.float32)
    out3 = jax.block_until_ready(pointwise_conv1d(x3, weight, bias))
    ref3 = _ref_conv1d(x3, weight, bias)
    assert out3.shape == (1, C_OUT, T3)
    assert jnp.allclose(out3, ref3, atol=1e-5, rtol=1e-5)

    # --- 4) stride / padding glue ---
    out4 = jax.block_until_ready(pointwise_conv1d(x, weight, bias, stride=2, padding=1))
    ref4 = _ref_conv1d(x, weight, bias, stride=2, padding=1)
    assert out4.shape == ref4.shape
    assert jnp.allclose(out4, ref4, atol=1e-5, rtol=1e-5)

    # --- 5) bf16 compute path (halves HBM traffic; f32 accumulate) ---
    out5 = jax.block_until_ready(
        pointwise_conv1d(x2, weight, bias, tile_t=128, compute_dtype=jnp.bfloat16))
    assert out5.shape == (B, C_OUT, T2)
    assert jnp.allclose(out5, ref2, atol=3e-2, rtol=3e-2)

    print("KERNEL_OK")
</pallas_src>

<mosaic_0001>
module attributes {stable_mosaic.version = 11 : i64} {
  func.func @_pointwise_conv1d_kernel(%arg0: i32, %arg1: i32, %arg2: memref<2x4x16xf32, #tpu.memory_space<vmem>>, %arg3: memref<8x4xf32, #tpu.memory_space<vmem>>, %arg4: memref<8x1xf32, #tpu.memory_space<vmem>>, %arg5: memref<2x8x16xf32, #tpu.memory_space<vmem>>) attributes {dimension_semantics = [#tpu.dimension_semantics<parallel>, #tpu.dimension_semantics<parallel>], iteration_bounds = array<i64: 1, 1>, scalar_prefetch = 0 : i64, scratch_operands = 0 : i64, tpu.core_type = #tpu.core_type<tc>, window_params = [{transform_indices = @transform_0, window_bounds = array<i64: 2, 4, 16>}, {pipeline_mode = #tpu.pipeline_mode<synchronous>, transform_indices = @transform_1, window_bounds = array<i64: 8, 4>}, {pipeline_mode = #tpu.pipeline_mode<synchronous>, transform_indices = @transform_2, window_bounds = array<i64: 8, 1>}, {transform_indices = @transform_3, window_bounds = array<i64: 2, 8, 16>}]} {
    %c0 = arith.constant 0 : index
    %c0_0 = arith.constant 0 : index
    %0 = vector.load %arg3[%c0, %c0_0] : memref<8x4xf32, #tpu.memory_space<vmem>>, vector<8x4xf32>
    %c0_1 = arith.constant 0 : index
    %c0_2 = arith.constant 0 : index
    %1 = vector.load %arg4[%c0_1, %c0_2] : memref<8x1xf32, #tpu.memory_space<vmem>>, vector<8x1xf32>
    %c0_3 = arith.constant 0 : index
    %c0_4 = arith.constant 0 : index
    %c0_5 = arith.constant 0 : index
    %2 = vector.load %arg2[%c0_3, %c0_4, %c0_5] : memref<2x4x16xf32, #tpu.memory_space<vmem>>, vector<2x4x16xf32>
    "tpu.trace_start"() <{level = 10 : i32, message = "oc,bct->bot"}> : () -> ()
    %cst = arith.constant dense<0.000000e+00> : vector<2x16x8xf32>
    %3 = tpu.matmul %2, %0, %cst {dimension_numbers = #tpu.dot_dimension_numbers<[1], [1], [0, 2], [0], [0, 0, 0, 2, 1, 0], [], []>} : vector<2x4x16xf32>, vector<8x4xf32>, vector<2x16x8xf32> -> vector<2x16x8xf32>
    %4 = tpu.transpose %3, [0, 2, 1] : vector<2x16x8xf32> -> vector<2x8x16xf32>
    "tpu.trace_stop"() : () -> ()
    %5 = vector.shape_cast %1 : vector<8x1xf32> to vector<1x8x1xf32>
    %6 = vector.broadcast %5 : vector<1x8x1xf32> to vector<2x8x16xf32>
    %7 = arith.addf %4, %6 : vector<2x8x16xf32>
    %c0_6 = arith.constant 0 : index
    %c0_7 = arith.constant 0 : index
    %c0_8 = arith.constant 0 : index
    %8 = vector.load %arg5[%c0_6, %c0_7, %c0_8] : memref<2x8x16xf32, #tpu.memory_space<vmem>>, vector<2x8x16xf32>
    tpu.vector_store %arg5[%c0_6, %c0_7, %c0_8], %7 {strides = array<i32>} : memref<2x8x16xf32, #tpu.memory_space<vmem>>, vector<2x8x16xf32>,
    return
  }
  func.func @transform_0(%arg0: i32, %arg1: i32) -> (i32, i32, i32) {
    %c0_i32 = arith.constant 0 : i32
    %c0_i32_0 = arith.constant 0 : i32
    return %arg0, %c0_i32, %arg1 : i32, i32, i32
  }
  func.func @transform_1(%arg0: i32, %arg1: i32) -> (i32, i32) {
    %c0_i32 = arith.constant 0 : i32
    %c0_i32_0 = arith.constant 0 : i32
    %c0_i32_1 = arith.constant 0 : i32
    return %c0_i32, %c0_i32_0 : i32, i32
  }
  func.func @transform_2(%arg0: i32, %arg1: i32) -> (i32, i32) {
    %c0_i32 = arith.constant 0 : i32
    %c0_i32_0 = arith.constant 0 : i32
    %c0_i32_1 = arith.constant 0 : i32
    return %c0_i32, %c0_i32_0 : i32, i32
  }
  func.func @transform_3(%arg0: i32, %arg1: i32) -> (i32, i32, i32) {
    %c0_i32 = arith.constant 0 : i32
    %c0_i32_0 = arith.constant 0 : i32
    return %arg0, %c0_i32, %arg1 : i32, i32, i32
  }
}

module attributes {stable_mosaic.version = 11 : i64} {
  func.func @_pointwise_conv1d_kernel(%arg0: i32, %arg1: i32, %arg2: memref<2x4x16xf32, #tpu.memory_space<vmem>>, %arg3: memref<8x4xf32, #tpu.memory_space<vmem>>, %arg4: memref<8x1xf32, #tpu.memory_space<vmem>>, %arg5: memref<2x8x16xf32, #tpu.memory_space<vmem>>) attributes {dimension_semantics = [#tpu.dimension_semantics<parallel>, #tpu.dimension_semantics<parallel>], iteration_bounds = array<i64: 1, 1>, scalar_prefetch = 0 : i64, scratch_operands = 0 : i64, tpu.core_type = #tpu.core_type<tc>, window_params = [{transform_indices = @transform_0, window_bounds = array<i64: 2, 4, 16>}, {pipeline_mode = #tpu.pipeline_mode<synchronous>, transform_indices = @transform_1, window_bounds = array<i64: 8, 4>}, {pipeline_mode = #tpu.pipeline_mode<synchronous>, transform_indices = @transform_2, window_bounds = array<i64: 8, 1>}, {transform_indices = @transform_3, window_bounds = array<i64: 2, 8, 16>}]} {
    %c0 = arith.constant 0 : index
    %c0_0 = arith.constant 0 : index
    %0 = vector.load %arg3[%c0, %c0_0] : memref<8x4xf32, #tpu.memory_space<vmem>>, vector<8x4xf32>
    %c0_1 = arith.constant 0 : index
    %c0_2 = arith.constant 0 : index
    %1 = vector.load %arg4[%c0_1, %c0_2] : memref<8x1xf32, #tpu.memory_space<vmem>>, vector<8x1xf32>
    %c0_3 = arith.constant 0 : index
    %c0_4 = arith.constant 0 : index
    %c0_5 = arith.constant 0 : index
    %2 = vector.load %arg2[%c0_3, %c0_4, %c0_5] : memref<2x4x16xf32, #tpu.memory_space<vmem>>, vector<2x4x16xf32>
    "tpu.trace_start"() <{level = 10 : i32, message = "oc,bct->bot"}> : () -> ()
    %cst = arith.constant dense<0.000000e+00> : vector<2x16x8xf32>
    %3 = tpu.matmul %2, %0, %cst {dimension_numbers = #tpu.dot_dimension_numbers<[1], [1], [0, 2], [0], [0, 0, 0, 2, 1, 0], [], []>} : vector<2x4x16xf32>, vector<8x4xf32>, vector<2x16x8xf32> -> vector<2x16x8xf32>
    %4 = tpu.transpose %3, [0, 2, 1] : vector<2x16x8xf32> -> vector<2x8x16xf32>
    "tpu.trace_stop"() : () -> ()
    %5 = vector.shape_cast %1 : vector<8x1xf32> to vector<1x8x1xf32>
    %6 = vector.broadcast %5 : vector<1x8x1xf32> to vector<2x8x16xf32>
    %7 = arith.addf %4, %6 : vector<2x8x16xf32>
    %c0_6 = arith.constant 0 : index
    %c0_7 = arith.constant 0 : index
    %c0_8 = arith.constant 0 : index
    %8 = vector.load %arg5[%c0_6, %c0_7, %c0_8] : memref<2x8x16xf32, #tpu.memory_space<vmem>>, vector<2x8x16xf32>
    tpu.vector_store %arg5[%c0_6, %c0_7, %c0_8], %7 {strides = array<i32>} : memref<2x8x16xf32, #tpu.memory_space<vmem>>, vector<2x8x16xf32>,
    return
  }
  func.func @transform_0(%arg0: i32, %arg1: i32) -> (i32, i32, i32) {
    %c0_i32 = arith.constant 0 : i32
    %c0_i32_0 = arith.constant 0 : i32
    return %arg0, %c0_i32, %arg1 : i32, i32, i32
  }
  func.func @transform_1(%arg0: i32, %arg1: i32) -> (i32, i32) {
    %c0_i32 = arith.constant 0 : i32
    %c0_i32_0 = arith.constant 0 : i32
    %c0_i32_1 = arith.constant 0 : i32
    return %c0_i32, %c0_i32_0 : i32, i32
  }
  func.func @transform_2(%arg0: i32, %arg1: i32) -> (i32, i32) {
    %c0_i32 = arith.constant 0 : i32
    %c0_i32_0 = arith.constant 0 : i32
    %c0_i32_1 = arith.constant 0 : i32
    return %c0_i32, %c0_i32_0 : i32, i32
  }
  func.func @transform_3(%arg0: i32, %arg1: i32) -> (i32, i32, i32) {
    %c0_i32 = arith.constant 0 : i32
    %c0_i32_0 = arith.constant 0 : i32
    return %arg0, %c0_i32, %arg1 : i32, i32, i32
  }
}

</mosaic_0001>

<llo_original>
// kernel: tpu_custom_call.1
$region0: #{tpu_custom_call.1}
  #allocation0 [shape = 'u32[]', space=smem, size = 0x4, offset = 0x4, fixed_abs, tag = 'smem constant byte address 0x4 - core index']
  #allocation1 [shape = 'u32[144,128]{1,0:T(1,128)}', space=vmem, size = 0x12000, scoped, tag = 'internal scratch']
  %s0 = inlined_call_operand.vmem [shape: f32[2,4,16], index: 0, kind: input, shape index: {}]
  %s1 = inlined_call_operand.vmem [shape: f32[8,4], index: 1, kind: input, shape index: {}]
  %s2 = inlined_call_operand.vmem [shape: f32[8,1], index: 2, kind: input, shape index: {}]
  %s3 = inlined_call_operand.hbm [shape: f32[2,8,16], index: 3, kind: output, shape index: {}]
  %s4 = sld [smem:[#allocation0]]
  $region22: #{tpu_custom_call.1} parent=0
    _
  %s6 = ssub.s32 1, %s4
  %s7 = scalar_select 0, %s6, %s4
  $region1: #{tpu_custom_call.1} parent=0
    #allocation2 [shape = 'u8[8192]{0}', space=vmem, size = 0x2000, scoped, tag = 'output window, operand 0, single buffered']
    #allocation3 [shape = 's32[1]{0}', space=sflag, size = 0x4, scoped, tag = 'scoped memory for tpu_custom_call.1']
    %8 = vsyncpa [#allocation3], 0
    // Predicated region
    $region2: #{tpu_custom_call.1} parent=1 // pred_check
      _
    $region3: #{tpu_custom_call.1} parent=1 // pred_check_branch
      %10 = sbr.rel (0) target = $region5
    $region4: #{tpu_custom_call.1} parent=1 // pred_region
      _
    $region5: #{tpu_custom_call.1} parent=1 // pred_fallthru
      _
    // Predicated region
    $region6: #{tpu_custom_call.1} parent=1 // pred_check
      _
    $region7: #{tpu_custom_call.1} parent=1 // pred_check_branch
      %12 = sbr.rel (0) target = $region9
    $region8: #{tpu_custom_call.1} parent=1 // pred_region
      _
    $region9: #{tpu_custom_call.1} parent=1 // pred_fallthru
      _
    // Predicated region
    $region10: #{tpu_custom_call.1} parent=1 // pred_check
      _
    $region11: #{tpu_custom_call.1} parent=1 // pred_check_branch
      %14 = sbr.rel (0) target = $region13
    $region12: #{tpu_custom_call.1} parent=1 // pred_region
      _
    $region13: #{tpu_custom_call.1} parent=1 // pred_fallthru
      _
    %v15 = vld [vmem:[%s1] sm:$0xff]
    %v16 = vld [vmem:[%s2] sm:$0xff]
    %v17 = vld [vmem:[%s0] sm:$0xf]
    %v18 = vld [vmem:[%s0 + $0x4] sm:$0xf]
    %19 = vxpose.xlu0.b32.start [1/16] %v17, 128
    %20 = vxpose.xlu0.b32.cont [2/16] 0.0, 128
    %21 = vxpose.xlu0.b32.cont [3/16] 0.0, 128
    %22 = vxpose.xlu0.b32.cont [4/16] 0.0, 128
    %23 = vxpose.xlu0.b32.cont [5/16] 0.0, 128
    %24 = vxpose.xlu0.b32.cont [6/16] 0.0, 128
    %25 = vxpose.xlu0.b32.cont [7/16] 0.0, 128
    %26 = vxpose.xlu0.b32.cont [8/16] 0.0, 128
    %27 = vxpose.xlu0.b32.cont [9/16] 0.0, 128
    %28 = vxpose.xlu0.b32.cont [10/16] 0.0, 128
    %29 = vxpose.xlu0.b32.cont [11/16] 0.0, 128
    %30 = vxpose.xlu0.b32.cont [12/16] 0.0, 128
    %31 = vxpose.xlu0.b32.cont [13/16] 0.0, 128
    %32 = vxpose.xlu0.b32.cont [14/16] 0.0, 128
    %33 = vxpose.xlu0.b32.cont [15/16] 0.0, 128
    %34 = vxpose.xlu0.b32.end [16/16] 0.0, 128
    %v35 = vpop.trf.xlu0
    %v36 = vpop.trf.xlu0
    %v37 = vpop.trf.xlu0
    %v38 = vpop.trf.xlu0
    %v39 = vpop.trf.xlu0
    %v40 = vpop.trf.xlu0
    %v41 = vpop.trf.xlu0
    %v42 = vpop.trf.xlu0
    %v43 = vpop.trf.xlu0
    %v44 = vpop.trf.xlu0
    %v45 = vpop.trf.xlu0
    %v46 = vpop.trf.xlu0
    %v47 = vpop.trf.xlu0
    %v48 = vpop.trf.xlu0
    %v49 = vpop.trf.xlu0
    %v50 = vpop.trf.xlu0
    %51 = vxpose.xlu0.b32.start [1/16] %v18, 128
    %52 = vxpose.xlu0.b32.cont [2/16] 0.0, 128
    %53 = vxpose.xlu0.b32.cont [3/16] 0.0, 128
    %54 = vxpose.xlu0.b32.cont [4/16] 0.0, 128
    %55 = vxpose.xlu0.b32.cont [5/16] 0.0, 128
    %56 = vxpose.xlu0.b32.cont [6/16] 0.0, 128
    %57 = vxpose.xlu0.b32.cont [7/16] 0.0, 128
    %58 = vxpose.xlu0.b32.cont [8/16] 0.0, 128
    %59 = vxpose.xlu0.b32.cont [9/16] 0.0, 128
    %60 = vxpose.xlu0.b32.cont [10/16] 0.0, 128
    %61 = vxpose.xlu0.b32.cont [11/16] 0.0, 128
    %62 = vxpose.xlu0.b32.cont [12/16] 0.0, 128
    %63 = vxpose.xlu0.b32.cont [13/16] 0.0, 128
    %64 = vxpose.xlu0.b32.cont [14/16] 0.0, 128
    %65 = vxpose.xlu0.b32.cont [15/16] 0.0, 128
    %66 = vxpose.xlu0.b32.end [16/16] 0.0, 128
    %v67 = vpop.trf.xlu0
    %v68 = vpop.trf.xlu0
    %v69 = vpop.trf.xlu0
    %v70 = vpop.trf.xlu0
    %v71 = vpop.trf.xlu0
    %v72 = vpop.trf.xlu0
    %v73 = vpop.trf.xlu0
    %v74 = vpop.trf.xlu0
    %v75 = vpop.trf.xlu0
    %v76 = vpop.trf.xlu0
    %v77 = vpop.trf.xlu0
    %v78 = vpop.trf.xlu0
    %v79 = vpop.trf.xlu0
    %v80 = vpop.trf.xlu0
    %v81 = vpop.trf.xlu0
    %v82 = vpop.trf.xlu0
    %vm83 = vcmask 31744
    %v85 = vsel %vm83, %v35, 0
    %v88 = vsel %vm83, %v36, 0
    %v91 = vsel %vm83, %v67, 0
    %v94 = vsel %vm83, %v68, 0
    %v97 = vsel %vm83, %v15, 0
    %99 = vmatprep.subr.mxu0 0.0
    %100 = vmatpush1.xpose.msra.mxu0 0.0
    %101 = vmatprep.subr.mxu0 0.0
    %102 = vmatpush1.xpose.msra.mxu0 0.0
    %103 = vmatprep.subr.mxu0 0.0
    %104 = vmatpush1.xpose.msra.mxu0 0.0
    %105 = vmatprep.subr.mxu0 0.0
    %106 = vmatpush1.xpose.msra.mxu0 0.0
    %107 = vmatprep.subr.mxu0 0.0
    %108 = vmatpush1.xpose.msra.mxu0 0.0
    %109 = vmatprep.subr.mxu0 0.0
    %110 = vmatpush1.xpose.msra.mxu0 0.0
    %111 = vmatprep.subr.mxu0 0.0
    %112 = vmatpush1.xpose.msra.mxu0 0.0
    %113 = vmatprep.subr.mxu0 0.0
    %114 = vmatpush1.xpose.msra.mxu0 0.0
    %115 = vmatprep.subr.mxu0 0.0
    %116 = vmatpush1.xpose.msra.mxu0 0.0
    %117 = vmatprep.subr.mxu0 0.0
    %118 = vmatpush1.xpose.msra.mxu0 0.0
    %119 = vmatprep.subr.mxu0 0.0
    %120 = vmatpush1.xpose.msra.mxu0 0.0
    %121 = vmatprep.subr.mxu0 0.0
    %122 = vmatpush1.xpose.msra.mxu0 0.0
    %123 = vmatprep.subr.mxu0 0.0
    %124 = vmatpush1.xpose.msra.mxu0 0.0
    %125 = vmatprep.subr.mxu0 0.0
    %126 = vmatpush1.xpose.msra.mxu0 0.0
    %127 = vmatprep.subr.mxu0 0.0
    %128 = vmatpush1.xpose.msra.mxu0 0.0
    %129 = vmatprep.subr.mxu0 0.0
    %130 = vmatpush1.xpose.msra.mxu0 %v97
    %131 = vmatprep.subr.mxu0 0.0
    %132 = vmatpush2.xpose.msra.mxu0 0.0
    %133 = vmatprep.subr.mxu0 0.0
    %134 = vmatpush2.xpose.msra.mxu0 0.0
    %135 = vmatprep.subr.mxu0 0.0
    %136 = vmatpush2.xpose.msra.mxu0 0.0
    %137 = vmatprep.subr.mxu0 0.0
    %138 = vmatpush2.xpose.msra.mxu0 0.0
    %139 = vmatprep.subr.mxu0 0.0
    %140 = vmatpush2.xpose.msra.mxu0 0.0
    %141 = vmatprep.subr.mxu0 0.0
    %142 = vmatpush2.xpose.msra.mxu0 0.0
    %143 = vmatprep.subr.mxu0 0.0
    %144 = vmatpush2.xpose.msra.mxu0 0.0
    %145 = vmatprep.subr.mxu0 0.0
    %146 = vmatpush2.xpose.msra.mxu0 0.0
    %147 = vmatprep.subr.mxu0 0.0
    %148 = vmatpush2.xpose.msra.mxu0 0.0
    %149 = vmatprep.subr.mxu0 0.0
    %150 = vmatpush2.xpose.msra.mxu0 0.0
    %151 = vmatprep.subr.mxu0 0.0
    %152 = vmatpush2.xpose.msra.mxu0 0.0
    %153 = vmatprep.subr.mxu0 0.0
    %154 = vmatpush2.xpose.msra.mxu0 0.0
    %155 = vmatprep.subr.mxu0 0.0
    %156 = vmatpush2.xpose.msra.mxu0 0.0
    %157 = vmatprep.subr.mxu0 0.0
    %158 = vmatpush2.xpose.msra.mxu0 0.0
    %159 = vmatprep.subr.mxu0 0.0
    %160 = vmatpush2.xpose.msra.mxu0 0.0
    %161 = vmatprep.subr.mxu0 0.0
    %162 = vmatpush2.xpose.msra.mxu0 0.0
    %163 = vmatprep.mubr.f32.mxu0 0.0
    %164 = vmatmul.mubr.f32.gmra.mxu0 %v85
    %v165 = vpop.f32.mrf.mxu0
    %v166 = vadd.f32 0.0, %v165
    %v167 = vpop.f32.mrf.mxu0
    %168 = vmatprep.mubr.f32.mxu0 0.0
    %169 = vmatmul.mubr.f32.gmra.mxu0 %v88
    %v170 = vpop.f32.mrf.mxu0
    %v171 = vadd.f32 0.0, %v170
    %v172 = vpop.f32.mrf.mxu0
    %173 = vmatprep.mubr.f32.mxu0 0.0
    %174 = vmatmul.mubr.f32.gmra.mxu0 %v91
    %v175 = vpop.f32.mrf.mxu0
    %v176 = vadd.f32 0.0, %v175
    %v177 = vpop.f32.mrf.mxu0
    %178 = vmatprep.mubr.f32.mxu0 0.0
    %179 = vmatmul.mubr.f32.gmra.mxu0 %v94
    %v180 = vpop.f32.mrf.mxu0
    %v181 = vadd.f32 0.0, %v180
    %v182 = vpop.f32.mrf.mxu0
    %183 = vdwg.mxu0
    %184 = vxpose.xlu0.b32.start [1/16] %v166, 128
    %185 = vxpose.xlu0.b32.cont [2/16] %v171, 128
    %186 = vxpose.xlu0.b32.cont [3/16] 0.0, 128
    %187 = vxpose.xlu0.b32.cont [4/16] 0.0, 128
    %188 = vxpose.xlu0.b32.cont [5/16] 0.0, 128
    %189 = vxpose.xlu0.b32.cont [6/16] 0.0, 128
    %190 = vxpose.xlu0.b32.cont [7/16] 0.0, 128
    %191 = vxpose.xlu0.b32.cont [8/16] 0.0, 128
    %192 = vxpose.xlu0.b32.cont [9/16] 0.0, 128
    %193 = vxpose.xlu0.b32.cont [10/16] 0.0, 128
    %194 = vxpose.xlu0.b32.cont [11/16] 0.0, 128
    %195 = vxpose.xlu0.b32.cont [12/16] 0.0, 128
    %196 = vxpose.xlu0.b32.cont [13/16] 0.0, 128
    %197 = vxpose.xlu0.b32.cont [14/16] 0.0, 128
    %198 = vxpose.xlu0.b32.cont [15/16] 0.0, 128
    %199 = vxpose.xlu0.b32.end [16/16] 0.0, 128
    %v200 = vpop.trf.xlu0
    %v201 = vpop.trf.xlu0
    %v202 = vpop.trf.xlu0
    %v203 = vpop.trf.xlu0
    %v204 = vpop.trf.xlu0
    %v205 = vpop.trf.xlu0
    %v206 = vpop.trf.xlu0
    %v207 = vpop.trf.xlu0
    %v208 = vpop.trf.xlu0
    %v209 = vpop.trf.xlu0
    %v210 = vpop.trf.xlu0
    %v211 = vpop.trf.xlu0
    %v212 = vpop.trf.xlu0
    %v213 = vpop.trf.xlu0
    %v214 = vpop.trf.xlu0
    %v215 = vpop.trf.xlu0
    %216 = vxpose.xlu0.b32.start [1/16] %v176, 128
    %217 = vxpose.xlu0.b32.cont [2/16] %v181, 128
    %218 = vxpose.xlu0.b32.cont [3/16] 0.0, 128
    %219 = vxpose.xlu0.b32.cont [4/16] 0.0, 128
    %220 = vxpose.xlu0.b32.cont [5/16] 0.0, 128
    %221 = vxpose.xlu0.b32.cont [6/16] 0.0, 128
    %222 = vxpose.xlu0.b32.cont [7/16] 0.0, 128
    %223 = vxpose.xlu0.b32.cont [8/16] 0.0, 128
    %224 = vxpose.xlu0.b32.cont [9/16] 0.0, 128
    %225 = vxpose.xlu0.b32.cont [10/16] 0.0, 128
    %226 = vxpose.xlu0.b32.cont [11/16] 0.0, 128
    %227 = vxpose.xlu0.b32.cont [12/16] 0.0, 128
    %228 = vxpose.xlu0.b32.cont [13/16] 0.0, 128
    %229 = vxpose.xlu0.b32.cont [14/16] 0.0, 128
    %230 = vxpose.xlu0.b32.cont [15/16] 0.0, 128
    %231 = vxpose.xlu0.b32.end [16/16] 0.0, 128
    %v232 = vpop.trf.xlu0
    %v233 = vpop.trf.xlu0
    %v234 = vpop.trf.xlu0
    %v235 = vpop.trf.xlu0
    %v236 = vpop.trf.xlu0
    %v237 = vpop.trf.xlu0
    %v238 = vpop.trf.xlu0
    %v239 = vpop.trf.xlu0
    %v240 = vpop.trf.xlu0
    %v241 = vpop.trf.xlu0
    %v242 = vpop.trf.xlu0
    %v243 = vpop.trf.xlu0
    %v244 = vpop.trf.xlu0
    %v245 = vpop.trf.xlu0
    %v246 = vpop.trf.xlu0
    %v247 = vpop.trf.xlu0
    %249 = vset.pattern.permute.xlu0 0
    %250 = vperm.xlu0 %249, %v16
    %v251 = vpop.permute.xlu0 %250
    %v253 = vadd.f32 %v200, %v251
    %v254 = vadd.f32 %v232, %v251
    %vm255 = vcmask 130048
    %256 = vst.msk [vmem:[#allocation2] sm:$0xff] %vm255, %v253
    %257 = vst.msk [vmem:[#allocation2 + $0x8] sm:$0xff] %vm255, %v254
    // Predicated region
    $region14: #{tpu_custom_call.1} parent=1 // pred_check
      _
    $region15: #{tpu_custom_call.1} parent=1 // pred_check_branch
      %259 = sbr.rel (0) target = $region17
    $region16: #{tpu_custom_call.1} parent=1 // pred_region
      %s261 = ssub.s32 256, 256
      %262 = vsyncadd [#allocation3], %s261
      %s263 = sshll.u32 [#allocation2], 4
      %s264 = int_to_ptr.vmem [resolvable:$true] %s263
      %269 = dma.vmem_to_hbm [thread:$0]  %s264, 256, %s3, [#allocation3], 128, 128, 8
    $region17: #{tpu_custom_call.1} parent=1 // pred_fallthru
      _
    // Predicated region
    $region18: #{tpu_custom_call.1} parent=1 // pred_check
      _
    $region19: #{tpu_custom_call.1} parent=1 // pred_check_branch
      %271 = sbr.rel (0) target = $region21
    $region20: #{tpu_custom_call.1} parent=1 // pred_region
      %272 = dma.done [#allocation3], 256
    $region21: #{tpu_custom_call.1} parent=1 // pred_fallthru
      _
    %273 = vsyncpa [#allocation3], 1

// kernel: tpu_custom_call.1
$region0: #{tpu_custom_call.1}
  #allocation0 [shape = 'u32[]', space=smem, size = 0x4, offset = 0x4, fixed_abs, tag = 'smem constant byte address 0x4 - core index']
  #allocation1 [shape = 'u32[144,128]{1,0:T(1,128)}', space=vmem, size = 0x12000, scoped, tag = 'internal scratch']
  %s0 = inlined_call_operand.vmem [shape: f32[2,4,16], index: 0, kind: input, shape index: {}]
  %s1 = inlined_call_operand.vmem [shape: f32[8,4], index: 1, kind: input, shape index: {}]
  %s2 = inlined_call_operand.vmem [shape: f32[8,1], index: 2, kind: input, shape index: {}]
  %s3 = inlined_call_operand.hbm [shape: f32[2,8,16], index: 3, kind: output, shape index: {}]
  %s4 = sld [smem:[#allocation0]]
  $region22: #{tpu_custom_call.1} parent=0
    _
  %s6 = ssub.s32 1, %s4
  %s7 = scalar_select 0, %s6, %s4
  $region1: #{tpu_custom_call.1} parent=0
    #allocation2 [shape = 'u8[8192]{0}', space=vmem, size = 0x2000, scoped, tag = 'output window, operand 0, single buffered']
    #allocation3 [shape = 's32[1]{0}', space=sflag, size = 0x4, scoped, tag = 'scoped memory for tpu_custom_call.1']
    %8 = vsyncpa [#allocation3], 0
    // Predicated region
    $region2: #{tpu_custom_call.1} parent=1 // pred_check
      _
    $region3: #{tpu_custom_call.1} parent=1 // pred_check_branch
      %10 = sbr.rel (0) target = $region5
    $region4: #{tpu_custom_call.1} parent=1 // pred_region
      _
    $region5: #{tpu_custom_call.1} parent=1 // pred_fallthru
      _
    // Predicated region
    $region6: #{tpu_custom_call.1} parent=1 // pred_check
      _
    $region7: #{tpu_custom_call.1} parent=1 // pred_check_branch
      %12 = sbr.rel (0) target = $region9
    $region8: #{tpu_custom_call.1} parent=1 // pred_region
      _
    $region9: #{tpu_custom_call.1} parent=1 // pred_fallthru
      _
    // Predicated region
    $region10: #{tpu_custom_call.1} parent=1 // pred_check
      _
    $region11: #{tpu_custom_call.1} parent=1 // pred_check_branch
      %14 = sbr.rel (0) target = $region13
    $region12: #{tpu_custom_call.1} parent=1 // pred_region
      _
    $region13: #{tpu_custom_call.1} parent=1 // pred_fallthru
      _
    %v15 = vld [vmem:[%s1] sm:$0xff]
    %v16 = vld [vmem:[%s2] sm:$0xff]
    %v17 = vld [vmem:[%s0] sm:$0xf]
    %v18 = vld [vmem:[%s0 + $0x4] sm:$0xf]
    %19 = vxpose.xlu0.b32.start [1/16] %v17, 128
    %20 = vxpose.xlu0.b32.cont [2/16] 0.0, 128
    %21 = vxpose.xlu0.b32.cont [3/16] 0.0, 128
    %22 = vxpose.xlu0.b32.cont [4/16] 0.0, 128
    %23 = vxpose.xlu0.b32.cont [5/16] 0.0, 128
    %24 = vxpose.xlu0.b32.cont [6/16] 0.0, 128
    %25 = vxpose.xlu0.b32.cont [7/16] 0.0, 128
    %26 = vxpose.xlu0.b32.cont [8/16] 0.0, 128
    %27 = vxpose.xlu0.b32.cont [9/16] 0.0, 128
    %28 = vxpose.xlu0.b32.cont [10/16] 0.0, 128
    %29 = vxpose.xlu0.b32.cont [11/16] 0.0, 128
    %30 = vxpose.xlu0.b32.cont [12/16] 0.0, 128
    %31 = vxpose.xlu0.b32.cont [13/16] 0.0, 128
    %32 = vxpose.xlu0.b32.cont [14/16] 0.0, 128
    %33 = vxpose.xlu0.b32.cont [15/16] 0.0, 128
    %34 = vxpose.xlu0.b32.end [16/16] 0.0, 128
    %v35 = vpop.trf.xlu0
    %v36 = vpop.trf.xlu0
    %v37 = vpop.trf.xlu0
    %v38 = vpop.trf.xlu0
    %v39 = vpop.trf.xlu0
    %v40 = vpop.trf.xlu0
    %v41 = vpop.trf.xlu0
    %v42 = vpop.trf.xlu0
    %v43 = vpop.trf.xlu0
    %v44 = vpop.trf.xlu0
    %v45 = vpop.trf.xlu0
    %v46 = vpop.trf.xlu0
    %v47 = vpop.trf.xlu0
    %v48 = vpop.trf.xlu0
    %v49 = vpop.trf.xlu0
    %v50 = vpop.trf.xlu0
    %51 = vxpose.xlu0.b32.start [1/16] %v18, 128
    %52 = vxpose.xlu0.b32.cont [2/16] 0.0, 128
    %53 = vxpose.xlu0.b32.cont [3/16] 0.0, 128
    %54 = vxpose.xlu0.b32.cont [4/16] 0.0, 128
    %55 = vxpose.xlu0.b32.cont [5/16] 0.0, 128
    %56 = vxpose.xlu0.b32.cont [6/16] 0.0, 128
    %57 = vxpose.xlu0.b32.cont [7/16] 0.0, 128
    %58 = vxpose.xlu0.b32.cont [8/16] 0.0, 128
    %59 = vxpose.xlu0.b32.cont [9/16] 0.0, 128
    %60 = vxpose.xlu0.b32.cont [10/16] 0.0, 128
    %61 = vxpose.xlu0.b32.cont [11/16] 0.0, 128
    %62 = vxpose.xlu0.b32.cont [12/16] 0.0, 128
    %63 = vxpose.xlu0.b32.cont [13/16] 0.0, 128
    %64 = vxpose.xlu0.b32.cont [14/16] 0.0, 128
    %65 = vxpose.xlu0.b32.cont [15/16] 0.0, 128
    %66 = vxpose.xlu0.b32.end [16/16] 0.0, 128
    %v67 = vpop.trf.xlu0
    %v68 = vpop.trf.xlu0
    %v69 = vpop.trf.xlu0
    %v70 = vpop.trf.xlu0
    %v71 = vpop.trf.xlu0
    %v72 = vpop.trf.xlu0
    %v73 = vpop.trf.xlu0
    %v74 = vpop.trf.xlu0
    %v75 = vpop.trf.xlu0
    %v76 = vpop.trf.xlu0
    %v77 = vpop.trf.xlu0
    %v78 = vpop.trf.xlu0
    %v79 = vpop.trf.xlu0
    %v80 = vpop.trf.xlu0
    %v81 = vpop.trf.xlu0
    %v82 = vpop.trf.xlu0
    %vm83 = vcmask 31744
    %v85 = vsel %vm83, %v35, 0
    %v88 = vsel %vm83, %v36, 0
    %v91 = vsel %vm83, %v67, 0
    %v94 = vsel %vm83, %v68, 0
    %v97 = vsel %vm83, %v15, 0
    %99 = vmatprep.subr.mxu0 0.0
    %100 = vmatpush1.xpose.msra.mxu0 0.0
    %101 = vmatprep.subr.mxu0 0.0
    %102 = vmatpush1.xpose.msra.mxu0 0.0
    %103 = vmatprep.subr.mxu0 0.0
    %104 = vmatpush1.xpose.msra.mxu0 0.0
    %105 = vmatprep.subr.mxu0 0.0
    %106 = vmatpush1.xpose.msra.mxu0 0.0
    %107 = vmatprep.subr.mxu0 0.0
    %108 = vmatpush1.xpose.msra.mxu0 0.0
    %109 = vmatprep.subr.mxu0 0.0
    %110 = vmatpush1.xpose.msra.mxu0 0.0
    %111 = vmatprep.subr.mxu0 0.0
    %112 = vmatpush1.xpose.msra.mxu0 0.0
    %113 = vmatprep.subr.mxu0 0.0
    %114 = vmatpush1.xpose.msra.mxu0 0.0
    %115 = vmatprep.subr.mxu0 0.0
    %116 = vmatpush1.xpose.msra.mxu0 0.0
    %117 = vmatprep.subr.mxu0 0.0
    %118 = vmatpush1.xpose.msra.mxu0 0.0
    %119 = vmatprep.subr.mxu0 0.0
    %120 = vmatpush1.xpose.msra.mxu0 0.0
    %121 = vmatprep.subr.mxu0 0.0
    %122 = vmatpush1.xpose.msra.mxu0 0.0
    %123 = vmatprep.subr.mxu0 0.0
    %124 = vmatpush1.xpose.msra.mxu0 0.0
    %125 = vmatprep.subr.mxu0 0.0
    %126 = vmatpush1.xpose.msra.mxu0 0.0
    %127 = vmatprep.subr.mxu0 0.0
    %128 = vmatpush1.xpose.msra.mxu0 0.0
    %129 = vmatprep.subr.mxu0 0.0
    %130 = vmatpush1.xpose.msra.mxu0 %v97
    %131 = vmatprep.subr.mxu0 0.0
    %132 = vmatpush2.xpose.msra.mxu0 0.0
    %133 = vmatprep.subr.mxu0 0.0
    %134 = vmatpush2.xpose.msra.mxu0 0.0
    %135 = vmatprep.subr.mxu0 0.0
    %136 = vmatpush2.xpose.msra.mxu0 0.0
    %137 = vmatprep.subr.mxu0 0.0
    %138 = vmatpush2.xpose.msra.mxu0 0.0
    %139 = vmatprep.subr.mxu0 0.0
    %140 = vmatpush2.xpose.msra.mxu0 0.0
    %141 = vmatprep.subr.mxu0 0.0
    %142 = vmatpush2.xpose.msra.mxu0 0.0
    %143 = vmatprep.subr.mxu0 0.0
    %144 = vmatpush2.xpose.msra.mxu0 0.0
    %145 = vmatprep.subr.mxu0 0.0
    %146 = vmatpush2.xpose.msra.mxu0 0.0
    %147 = vmatprep.subr.mxu0 0.0
    %148 = vmatpush2.xpose.msra.mxu0 0.0
    %149 = vmatprep.subr.mxu0 0.0
    %150 = vmatpush2.xpose.msra.mxu0 0.0
    %151 = vmatprep.subr.mxu0 0.0
    %152 = vmatpush2.xpose.msra.mxu0 0.0
    %153 = vmatprep.subr.mxu0 0.0
    %154 = vmatpush2.xpose.msra.mxu0 0.0
    %155 = vmatprep.subr.mxu0 0.0
    %156 = vmatpush2.xpose.msra.mxu0 0.0
    %157 = vmatprep.subr.mxu0 0.0
    %158 = vmatpush2.xpose.msra.mxu0 0.0
    %159 = vmatprep.subr.mxu0 0.0
    %160 = vmatpush2.xpose.msra.mxu0 0.0
    %161 = vmatprep.subr.mxu0 0.0
    %162 = vmatpush2.xpose.msra.mxu0 0.0
    %163 = vmatprep.mubr.f32.mxu0 0.0
    %164 = vmatmul.mubr.f32.gmra.mxu0 %v85
    %v165 = vpop.f32.mrf.mxu0
    %v166 = vadd.f32 0.0, %v165
    %v167 = vpop.f32.mrf.mxu0
    %168 = vmatprep.mubr.f32.mxu0 0.0
    %169 = vmatmul.mubr.f32.gmra.mxu0 %v88
    %v170 = vpop.f32.mrf.mxu0
    %v171 = vadd.f32 0.0, %v170
    %v172 = vpop.f32.mrf.mxu0
    %173 = vmatprep.mubr.f32.mxu0 0.0
    %174 = vmatmul.mubr.f32.gmra.mxu0 %v91
    %v175 = vpop.f32.mrf.mxu0
    %v176 = vadd.f32 0.0, %v175
    %v177 = vpop.f32.mrf.mxu0
    %178 = vmatprep.mubr.f32.mxu0 0.0
    %179 = vmatmul.mubr.f32.gmra.mxu0 %v94
    %v180 = vpop.f32.mrf.mxu0
    %v181 = vadd.f32 0.0, %v180
    %v182 = vpop.f32.mrf.mxu0
    %183 = vdwg.mxu0
    %184 = vxpose.xlu0.b32.start [1/16] %v166, 128
    %185 = vxpose.xlu0.b32.cont [2/16] %v171, 128
    %186 = vxpose.xlu0.b32.cont [3/16] 0.0, 128
    %187 = vxpose.xlu0.b32.cont [4/16] 0.0, 128
    %188 = vxpose.xlu0.b32.cont [5/16] 0.0, 128
    %189 = vxpose.xlu0.b32.cont [6/16] 0.0, 128
    %190 = vxpose.xlu0.b32.cont [7/16] 0.0, 128
    %191 = vxpose.xlu0.b32.cont [8/16] 0.0, 128
    %192 = vxpose.xlu0.b32.cont [9/16] 0.0, 128
    %193 = vxpose.xlu0.b32.cont [10/16] 0.0, 128
    %194 = vxpose.xlu0.b32.cont [11/16] 0.0, 128
    %195 = vxpose.xlu0.b32.cont [12/16] 0.0, 128
    %196 = vxpose.xlu0.b32.cont [13/16] 0.0, 128
    %197 = vxpose.xlu0.b32.cont [14/16] 0.0, 128
    %198 = vxpose.xlu0.b32.cont [15/16] 0.0, 128
    %199 = vxpose.xlu0.b32.end [16/16] 0.0, 128
    %v200 = vpop.trf.xlu0
    %v201 = vpop.trf.xlu0
    %v202 = vpop.trf.xlu0
    %v203 = vpop.trf.xlu0
    %v204 = vpop.trf.xlu0
    %v205 = vpop.trf.xlu0
    %v206 = vpop.trf.xlu0
    %v207 = vpop.trf.xlu0
    %v208 = vpop.trf.xlu0
    %v209 = vpop.trf.xlu0
    %v210 = vpop.trf.xlu0
    %v211 = vpop.trf.xlu0
    %v212 = vpop.trf.xlu0
    %v213 = vpop.trf.xlu0
    %v214 = vpop.trf.xlu0
    %v215 = vpop.trf.xlu0
    %216 = vxpose.xlu0.b32.start [1/16] %v176, 128
    %217 = vxpose.xlu0.b32.cont [2/16] %v181, 128
    %218 = vxpose.xlu0.b32.cont [3/16] 0.0, 128
    %219 = vxpose.xlu0.b32.cont [4/16] 0.0, 128
    %220 = vxpose.xlu0.b32.cont [5/16] 0.0, 128
    %221 = vxpose.xlu0.b32.cont [6/16] 0.0, 128
    %222 = vxpose.xlu0.b32.cont [7/16] 0.0, 128
    %223 = vxpose.xlu0.b32.cont [8/16] 0.0, 128
    %224 = vxpose.xlu0.b32.cont [9/16] 0.0, 128
    %225 = vxpose.xlu0.b32.cont [10/16] 0.0, 128
    %226 = vxpose.xlu0.b32.cont [11/16] 0.0, 128
    %227 = vxpose.xlu0.b32.cont [12/16] 0.0, 128
    %228 = vxpose.xlu0.b32.cont [13/16] 0.0, 128
    %229 = vxpose.xlu0.b32.cont [14/16] 0.0, 128
    %230 = vxpose.xlu0.b32.cont [15/16] 0.0, 128
    %231 = vxpose.xlu0.b32.end [16/16] 0.0, 128
    %v232 = vpop.trf.xlu0
    %v233 = vpop.trf.xlu0
    %v234 = vpop.trf.xlu0
    %v235 = vpop.trf.xlu0
    %v236 = vpop.trf.xlu0
    %v237 = vpop.trf.xlu0
    %v238 = vpop.trf.xlu0
    %v239 = vpop.trf.xlu0
    %v240 = vpop.trf.xlu0
    %v241 = vpop.trf.xlu0
    %v242 = vpop.trf.xlu0
    %v243 = vpop.trf.xlu0
    %v244 = vpop.trf.xlu0
    %v245 = vpop.trf.xlu0
    %v246 = vpop.trf.xlu0
    %v247 = vpop.trf.xlu0
    %249 = vset.pattern.permute.xlu0 0
    %250 = vperm.xlu0 %249, %v16
    %v251 = vpop.permute.xlu0 %250
    %v253 = vadd.f32 %v200, %v251
    %v254 = vadd.f32 %v232, %v251
    %vm255 = vcmask 130048
    %256 = vst.msk [vmem:[#allocation2] sm:$0xff] %vm255, %v253
    %257 = vst.msk [vmem:[#allocation2 + $0x8] sm:$0xff] %vm255, %v254
    // Predicated region
    $region14: #{tpu_custom_call.1} parent=1 // pred_check
      _
    $region15: #{tpu_custom_call.1} parent=1 // pred_check_branch
      %259 = sbr.rel (0) target = $region17
    $region16: #{tpu_custom_call.1} parent=1 // pred_region
      %s261 = ssub.s32 256, 256
      %262 = vsyncadd [#allocation3], %s261
      %s263 = sshll.u32 [#allocation2], 4
      %s264 = int_to_ptr.vmem [resolvable:$true] %s263
      %269 = dma.vmem_to_hbm [thread:$0]  %s264, 256, %s3, [#allocation3], 128, 128, 8
    $region17: #{tpu_custom_call.1} parent=1 // pred_fallthru
      _
    // Predicated region
    $region18: #{tpu_custom_call.1} parent=1 // pred_check
      _
    $region19: #{tpu_custom_call.1} parent=1 // pred_check_branch
      %271 = sbr.rel (0) target = $region21
    $region20: #{tpu_custom_call.1} parent=1 // pred_region
      %272 = dma.done [#allocation3], 256
    $region21: #{tpu_custom_call.1} parent=1 // pred_fallthru
      _
    %273 = vsyncpa [#allocation3], 1

</llo_original>
